<compile_context>
chip_gen: v5e
topology: v5e:2x2
jax: 0.10.0
libtpu: 0.0.40
codegen_flags: <defaults>
</compile_context>

<pallas_src>
import functools

import jax
import jax.numpy as jnp
from jax.experimental import pallas as pl
from jax.experimental.pallas import tpu as pltpu


def _round_up(a: int, b: int) -> int:
    return ((a + b - 1) // b) * b


def _cdiv(a: int, b: int) -> int:
    return (a + b - 1) // b


def _vmem_budget_bytes() -> int:
    # Physical VMEM: 128 MiB on v5e/v6e, 64 MiB on v7x.  Query when possible,
    # fall back to the conservative (v7x-safe) figure otherwise.
    cap = 64 * 1024 * 1024
    try:
        info = pltpu.get_tpu_info()
        cap = int(getattr(info, "vmem_capacity_bytes", cap))
    except Exception:
        pass
    # Leave headroom for compiler scratch; never ask for more than ~100 MiB.
    return min((cap * 3) // 4, 100 * 1024 * 1024)


def _mask_padded_cols(logits, out_valid: int):
    if out_valid < logits.shape[-1]:
        col = jax.lax.broadcasted_iota(jnp.int32, logits.shape, logits.ndim - 1)
        logits = jnp.where(col < out_valid, logits, -jnp.inf)
    return logits


def _softmax_lastdim(logits):
    # Numerically stable softmax; exact divide so rows sum to 1 to f32 rounding.
    m = jnp.max(logits, axis=-1, keepdims=True)
    e = jnp.exp(logits - m)
    denom = jnp.sum(e, axis=-1, keepdims=True)
    return e / denom


def _maybe_cast(x, mxu_dtype):
    if mxu_dtype is not None and x.dtype != mxu_dtype:
        return x.astype(mxu_dtype)
    return x


# ----------------------------------------------------------------------------
# Fast path: full-K weight resident in VMEM, grid = (batch_tiles,)
# ----------------------------------------------------------------------------
def fc_softmax_fullk_kernel(x_ref, w_ref, o_ref, *, out_valid: int, mxu_dtype):
    # x_ref: (TB, K_p), w_ref: (K_p, O_p) [constant index_map -> resident],
    # o_ref: (TB, O_p)
    x = _maybe_cast(x_ref[...], mxu_dtype)
    w = _maybe_cast(w_ref[...], mxu_dtype)
    logits = jnp.dot(x, w, preferred_element_type=jnp.float32)
    logits = _mask_padded_cols(logits, out_valid)
    o_ref[...] = _softmax_lastdim(logits).astype(o_ref.dtype)


# ----------------------------------------------------------------------------
# General path: K tiled, persistent f32 VMEM accumulator, grid = (batch, K)
# ----------------------------------------------------------------------------
def fc_softmax_tiled_kernel(x_ref, w_ref, o_ref, acc_ref, *, out_valid: int,
                            mxu_dtype):
    # x_ref: (TB, TK), w_ref: (TK, O_p), o_ref: (TB, O_p), acc_ref f32 scratch.
    k = pl.program_id(1)

    @pl.when(k == 0)
    def _():
        acc_ref[...] = jnp.zeros_like(acc_ref)

    x = _maybe_cast(x_ref[...], mxu_dtype)
    w = _maybe_cast(w_ref[...], mxu_dtype)
    acc_ref[...] += jnp.dot(x, w, preferred_element_type=jnp.float32)

    @pl.when(k == pl.num_programs(1) - 1)
    def _():
        logits = _mask_padded_cols(acc_ref[...], out_valid)
        o_ref[...] = _softmax_lastdim(logits).astype(o_ref.dtype)


def fc_forward(x, weight, *, tb: int = 256, tk: int = 1024,
               use_bf16_mxu: bool = True):
    """x: (B, in_size); weight: (out_size, in_size) (torch nn.Linear layout)."""
    B, K = x.shape
    O, Kw = weight.shape
    assert K == Kw, "in_size mismatch between x and weight"

    xbytes = jnp.dtype(x.dtype).itemsize
    wbytes = jnp.dtype(weight.dtype).itemsize
    obytes = xbytes

    # bf16 MXU path (f32 accumulate) when inputs are f32/bf16.
    if use_bf16_mxu and x.dtype in (jnp.float32, jnp.bfloat16) \
            and weight.dtype in (jnp.float32, jnp.bfloat16):
        mxu_dtype = jnp.bfloat16
    else:
        mxu_dtype = None

    # Hardware-friendly rounded dims (sublane 8, lane 128).
    Br = _round_up(B, 8)
    Kr = _round_up(K, 128)
    Or = _round_up(O, 128)

    # Batch tile: target `tb`, but guarantee >= 2 blocks on the parallel axis
    # (v7x has 2 TensorCores) whenever the batch is large enough to split.
    if Br >= 16:
        TB = min(_round_up(tb, 8), _round_up(_cdiv(Br, 2), 8))
    else:
        TB = Br
    B_p = _round_up(Br, TB)

    vmem_budget = _vmem_budget_bytes()

    # One-time HBM-side transpose (amortized across all batch tiles / calls):
    # kernel then does a standard (TB,TK) x (TK,O_p) contraction.
    w_t = weight.T  # (K, O)

    # --- Fast path: full-K, weight DMA'd once and kept resident in VMEM -----
    fast_vmem = (2 * TB * Kr * xbytes          # x double-buffer
                 + 2 * Kr * Or * wbytes        # weight (conservatively x2)
                 + 2 * TB * Or * obytes)       # output double-buffer
    use_fast = fast_vmem <= vmem_budget

    if use_fast:
        x_p = jnp.pad(x, ((0, B_p - B), (0, Kr - K))) if (B_p, Kr) != (B, K) else x
        w_p = jnp.pad(w_t, ((0, Kr - K), (0, Or - O))) if (Kr, Or) != (K, O) else w_t

        grid = (B_p // TB,)
        kernel = functools.partial(fc_softmax_fullk_kernel, out_valid=O,
                                   mxu_dtype=mxu_dtype)
        out_padded = pl.pallas_call(
            kernel,
            out_shape=jax.ShapeDtypeStruct((B_p, Or), x.dtype),
            grid_spec=pltpu.PrefetchScalarGridSpec(
                num_scalar_prefetch=0,
                grid=grid,
                in_specs=[
                    pl.BlockSpec((TB, Kr), lambda i: (i, 0)),
                    pl.BlockSpec((Kr, Or), lambda i: (0, 0)),  # resident weight
                ],
                out_specs=pl.BlockSpec((TB, Or), lambda i: (i, 0)),
            ),
            compiler_params=pltpu.CompilerParams(
                dimension_semantics=("parallel",),
                vmem_limit_bytes=vmem_budget,
            ),
            cost_estimate=pl.CostEstimate(
                flops=2 * B_p * Kr * Or,
                transcendentals=B_p * Or,
                bytes_accessed=(B_p * Kr * xbytes + Kr * Or * wbytes
                                + B_p * Or * obytes),
            ),
        )(x_p, w_p)
        return out_padded[:B, :O]

    # --- General path: tile K with a persistent f32 accumulator -------------
    TK = min(_round_up(tk, 128), Kr)

    def gen_vmem(tb_, tk_):
        return (2 * tb_ * tk_ * xbytes + 2 * tk_ * Or * wbytes
                + 2 * tb_ * Or * obytes + tb_ * Or * 4)

    while gen_vmem(TB, TK) > vmem_budget and TK > 128:
        TK = max(128, ((TK // 2) // 128) * 128)
    while gen_vmem(TB, TK) > vmem_budget and TB > 8:
        TB = max(8, ((TB // 2) // 8) * 8)

    B_p = _round_up(Br, TB)
    K_p = _round_up(Kr, TK)

    x_p = jnp.pad(x, ((0, B_p - B), (0, K_p - K))) if (B_p, K_p) != (B, K) else x
    w_p = jnp.pad(w_t, ((0, K_p - K), (0, Or - O))) if (K_p, Or) != (K, O) else w_t

    grid = (B_p // TB, K_p // TK)
    kernel = functools.partial(fc_softmax_tiled_kernel, out_valid=O,
                               mxu_dtype=mxu_dtype)
    out_padded = pl.pallas_call(
        kernel,
        out_shape=jax.ShapeDtypeStruct((B_p, Or), x.dtype),
        grid_spec=pltpu.PrefetchScalarGridSpec(
            num_scalar_prefetch=0,
            grid=grid,
            in_specs=[
                pl.BlockSpec((TB, TK), lambda i, k: (i, k)),
                pl.BlockSpec((TK, Or), lambda i, k: (k, 0)),
            ],
            out_specs=pl.BlockSpec((TB, Or), lambda i, k: (i, 0)),
            scratch_shapes=[pltpu.VMEM((TB, Or), jnp.float32)],
        ),
        compiler_params=pltpu.CompilerParams(
            dimension_semantics=("parallel", "arbitrary"),
            vmem_limit_bytes=vmem_budget,
        ),
        cost_estimate=pl.CostEstimate(
            flops=2 * B_p * K_p * Or,
            transcendentals=B_p * Or,
            # Weight is re-streamed once per batch tile in this path.
            bytes_accessed=(B_p * K_p * xbytes
                            + (B_p // TB) * K_p * Or * wbytes
                            + B_p * Or * obytes),
        ),
    )(x_p, w_p)
    return out_padded[:B, :O]


def reference_forward(x, weight):
    logits = x @ weight.T
    return jax.nn.softmax(logits, axis=1)


if __name__ == "__main__":
    key = jax.random.PRNGKey(0)
    k_x, k_w = jax.random.split(key)

    batch = 8
    in_size = 32
    out_size = 16

    # Mimic torch.nn.Linear init scale U(-1/sqrt(in), 1/sqrt(in)).
    bound = 1.0 / (in_size ** 0.5)
    weight = jax.random.uniform(
        k_w, (out_size, in_size), dtype=jnp.float32, minval=-bound, maxval=bound
    )
    x = jax.random.normal(k_x, (batch, in_size), dtype=jnp.float32)

    out = fc_forward(x, weight)
    out = jax.block_until_ready(out)

    ref = reference_forward(x, weight)
    assert out.shape == (batch, out_size)
    # bf16 MXU path -> slightly looser tolerance vs the f32 reference.
    assert jnp.allclose(out, ref, atol=5e-3, rtol=5e-3), "mismatch vs reference"
    # Exact divide in the softmax -> rows sum to 1 to f32 rounding.
    assert jnp.allclose(jnp.sum(out, axis=1), 1.0, atol=1e-5), "rows must sum to 1"

    print("KERNEL_OK")
</pallas_src>

<mosaic_0001>
module attributes {stable_mosaic.version = 11 : i64} {
  func.func @fc_softmax_fullk_kernel(%arg0: i32, %arg1: memref<8x128xf32, #tpu.memory_space<vmem>>, %arg2: memref<128x128xf32, #tpu.memory_space<vmem>>, %arg3: memref<8x128xf32, #tpu.memory_space<vmem>>) attributes {dimension_semantics = [#tpu.dimension_semantics<parallel>], iteration_bounds = array<i64: 1>, scalar_prefetch = 0 : i64, scratch_operands = 0 : i64, tpu.core_type = #tpu.core_type<tc>, window_params = [{transform_indices = @transform_0, window_bounds = array<i64: 8, 128>}, {pipeline_mode = #tpu.pipeline_mode<synchronous>, transform_indices = @transform_1, window_bounds = array<i64: 128, 128>}, {transform_indices = @transform_2, window_bounds = array<i64: 8, 128>}]} {
    %c0 = arith.constant 0 : index
    %c0_0 = arith.constant 0 : index
    %0 = vector.load %arg1[%c0, %c0_0] : memref<8x128xf32, #tpu.memory_space<vmem>>, vector<8x128xf32>
    %1 = arith.truncf %0 : vector<8x128xf32> to vector<8x128xbf16>
    %c0_1 = arith.constant 0 : index
    %c0_2 = arith.constant 0 : index
    %2 = vector.load %arg2[%c0_1, %c0_2] : memref<128x128xf32, #tpu.memory_space<vmem>>, vector<128x128xf32>
    %3 = arith.truncf %2 : vector<128x128xf32> to vector<128x128xbf16>
    %cst = arith.constant dense<0.000000e+00> : vector<8x128xf32>
    %4 = tpu.matmul %1, %3, %cst {dimension_numbers = #tpu.dot_dimension_numbers<[1], [0], [0], [1], [0, 0, 1, 1], [], []>} : vector<8x128xbf16>, vector<128x128xbf16>, vector<8x128xf32> -> vector<8x128xf32>
    %5 = tpu.iota {dimensions = array<i32: 1>} : vector<8x128xi32>
    %c16_i32 = arith.constant 16 : i32
    %6 = vector.broadcast %c16_i32 : i32 to vector<8x128xi32>
    %7 = arith.cmpi slt, %5, %6 : vector<8x128xi32>
    %cst_3 = arith.constant 0xFF800000 : f32
    %8 = vector.broadcast %cst_3 : f32 to vector<8x128xf32>
    %9 = arith.select %7, %4, %8 : vector<8x128xi1>, vector<8x128xf32>
    %cst_4 = arith.constant dense<0xFF800000> : vector<8xf32>
    %10 = vector.multi_reduction <maximumf>, %9, %cst_4 [1] : vector<8x128xf32> to vector<8xf32>
    %11 = vector.shape_cast %10 : vector<8xf32> to vector<8x1xf32>
    %12 = vector.broadcast %11 : vector<8x1xf32> to vector<8x128xf32>
    %13 = arith.subf %9, %12 : vector<8x128xf32>
    %14 = math.exp %13 : vector<8x128xf32>
    %cst_5 = arith.constant dense<0.000000e+00> : vector<8xf32>
    %15 = vector.multi_reduction <add>, %14, %cst_5 [1] : vector<8x128xf32> to vector<8xf32>
    %16 = vector.shape_cast %15 : vector<8xf32> to vector<8x1xf32>
    %17 = vector.broadcast %16 : vector<8x1xf32> to vector<8x128xf32>
    %18 = arith.divf %14, %17 : vector<8x128xf32>
    %c0_6 = arith.constant 0 : index
    %c0_7 = arith.constant 0 : index
    %19 = vector.load %arg3[%c0_6, %c0_7] : memref<8x128xf32, #tpu.memory_space<vmem>>, vector<8x128xf32>
    tpu.vector_store %arg3[%c0_6, %c0_7], %18 {strides = array<i32>} : memref<8x128xf32, #tpu.memory_space<vmem>>, vector<8x128xf32>,
    return
  }
  func.func @transform_0(%arg0: i32) -> (i32, i32) {
    %c0_i32 = arith.constant 0 : i32
    %c0_i32_0 = arith.constant 0 : i32
    return %arg0, %c0_i32 : i32, i32
  }
  func.func @transform_1(%arg0: i32) -> (i32, i32) {
    %c0_i32 = arith.constant 0 : i32
    %c0_i32_0 = arith.constant 0 : i32
    %c0_i32_1 = arith.constant 0 : i32
    return %c0_i32, %c0_i32_0 : i32, i32
  }
  func.func @transform_2(%arg0: i32) -> (i32, i32) {
    %c0_i32 = arith.constant 0 : i32
    %c0_i32_0 = arith.constant 0 : i32
    return %arg0, %c0_i32 : i32, i32
  }
}

</mosaic_0001>

<llo_original>
// kernel: tpu_custom_call.1
$region0: #{tpu_custom_call.1}
  #allocation0 [shape = 'u32[]', space=smem, size = 0x4, offset = 0x4, fixed_abs, tag = 'smem constant byte address 0x4 - core index']
  #allocation1 [shape = 'u32[72,128]{1,0:T(1,128)}', space=vmem, size = 0x9000, scoped, tag = 'internal scratch']
  %s0 = inlined_call_operand.hbm [shape: f32[8,128], index: 0, kind: input, shape index: {}]
  %s1 = inlined_call_operand.hbm [shape: f32[128,128], index: 1, kind: input, shape index: {}]
  %s2 = inlined_call_operand.hbm [shape: f32[8,128], index: 2, kind: output, shape index: {}]
  %s3 = sld [smem:[#allocation0]]
  $region26: #{tpu_custom_call.1} parent=0
    _
  %s5 = ssub.s32 1, %s3
  %s6 = scalar_select 0, %s5, %s3
  $region1: #{tpu_custom_call.1} parent=0
    #allocation2 [shape = 'u8[4096]{0}', space=vmem, size = 0x1000, scoped, tag = 'input window, operand 0, single buffered']
    #allocation3 [shape = 's32[1]{0}', space=sflag, size = 0x4, scoped, tag = 'scoped memory for tpu_custom_call.1']
    #allocation4 [shape = 's32[1]{0}', space=sflag, size = 0x4, scoped, tag = 'scoped memory for tpu_custom_call.1']
    #allocation5 [shape = 'u8[65536]{0}', space=vmem, size = 0x10000, scoped, tag = 'input window, operand 1, single buffered']
    #allocation6 [shape = 's32[1]{0}', space=sflag, size = 0x4, scoped, tag = 'scoped memory for tpu_custom_call.1']
    #allocation7 [shape = 'u8[4096]{0}', space=vmem, size = 0x1000, scoped, tag = 'output window, operand 0, single buffered']
    %7 = vsyncpa [#allocation3], 0
    %8 = vsyncpa [#allocation6], 0
    %9 = vsyncpa [#allocation4], 0
    // Predicated region
    $region2: #{tpu_custom_call.1} parent=1 // pred_check
      _
    $region3: #{tpu_custom_call.1} parent=1 // pred_check_branch
      %11 = sbr.rel (0) target = $region5
    $region4: #{tpu_custom_call.1} parent=1 // pred_region
      %13 = vsyncadd [#allocation3], 0
      %s15 = sshll.u32 %s0, 4
      %s16 = int_to_ptr.hbm [resolvable:$true] %s15
      %s17 = sshll.u32 [#allocation2], 4
      %s18 = int_to_ptr.vmem [resolvable:$true] %s17
      %20 = dma.hbm_to_vmem [thread:$0]  %s16, 128, %s18, [#allocation3]
    $region5: #{tpu_custom_call.1} parent=1 // pred_fallthru
      _
    // Predicated region
    $region6: #{tpu_custom_call.1} parent=1 // pred_check
      _
    $region7: #{tpu_custom_call.1} parent=1 // pred_check_branch
      %22 = sbr.rel (0) target = $region9
    $region8: #{tpu_custom_call.1} parent=1 // pred_region
      %24 = vsyncadd [#allocation6], 0
      %s25 = sshll.u32 %s1, 4
      %s26 = int_to_ptr.hbm [resolvable:$true] %s25
      %s27 = sshll.u32 [#allocation5], 4
      %s28 = int_to_ptr.vmem [resolvable:$true] %s27
      %33 = dma.hbm_to_vmem [thread:$0]  %s26, 2048, %s28, [#allocation6], 128, 128, 8
    $region9: #{tpu_custom_call.1} parent=1 // pred_fallthru
      _
    // Predicated region
    $region10: #{tpu_custom_call.1} parent=1 // pred_check
      _
    $region11: #{tpu_custom_call.1} parent=1 // pred_check_branch
      %35 = sbr.rel (0) target = $region13
    $region12: #{tpu_custom_call.1} parent=1 // pred_region
      %37 = dma.done [#allocation3], 128
    $region13: #{tpu_custom_call.1} parent=1 // pred_fallthru
      _
    // Predicated region
    $region14: #{tpu_custom_call.1} parent=1 // pred_check
      _
    $region15: #{tpu_custom_call.1} parent=1 // pred_check_branch
      %39 = sbr.rel (0) target = $region17
    $region16: #{tpu_custom_call.1} parent=1 // pred_region
      %41 = dma.done [#allocation6], 2048
    $region17: #{tpu_custom_call.1} parent=1 // pred_fallthru
      _
    %v42 = vld [vmem:[#allocation2] sm:$0xff]
    %v43 = vpack.c.bf16 %v42, %v42
    %v44 = vld [vmem:[#allocation5] sm:$0xff]
    %v45 = vld [vmem:[#allocation5 + $0x8] sm:$0xff]
    %v46 = vld [vmem:[#allocation5 + $0x10] sm:$0xff]
    %v47 = vld [vmem:[#allocation5 + $0x18] sm:$0xff]
    %v48 = vld [vmem:[#allocation5 + $0x20] sm:$0xff]
    %v49 = vld [vmem:[#allocation5 + $0x28] sm:$0xff]
    %v50 = vld [vmem:[#allocation5 + $0x30] sm:$0xff]
    %v51 = vld [vmem:[#allocation5 + $0x38] sm:$0xff]
    %v52 = vld [vmem:[#allocation5 + $0x40] sm:$0xff]
    %v53 = vld [vmem:[#allocation5 + $0x48] sm:$0xff]
    %v54 = vld [vmem:[#allocation5 + $0x50] sm:$0xff]
    %v55 = vld [vmem:[#allocation5 + $0x58] sm:$0xff]
    %v56 = vld [vmem:[#allocation5 + $0x60] sm:$0xff]
    %v57 = vld [vmem:[#allocation5 + $0x68] sm:$0xff]
    %v58 = vld [vmem:[#allocation5 + $0x70] sm:$0xff]
    %v59 = vld [vmem:[#allocation5 + $0x78] sm:$0xff]
    %v60 = vpack.c.bf16 %v45, %v44
    %v61 = vpack.c.bf16 %v47, %v46
    %v62 = vpack.c.bf16 %v49, %v48
    %v63 = vpack.c.bf16 %v51, %v50
    %v64 = vpack.c.bf16 %v53, %v52
    %v65 = vpack.c.bf16 %v55, %v54
    %v66 = vpack.c.bf16 %v57, %v56
    %v67 = vpack.c.bf16 %v59, %v58
    %68 = vmatpush.bf16.msra.mxu0 %v67
    %69 = vmatpush.bf16.msra.mxu0 %v66
    %70 = vmatpush.bf16.msra.mxu0 %v65
    %71 = vmatpush.bf16.msra.mxu0 %v64
    %72 = vmatpush.bf16.msra.mxu0 %v63
    %73 = vmatpush.bf16.msra.mxu0 %v62
    %74 = vmatpush.bf16.msra.mxu0 %v61
    %75 = vmatpush.bf16.msra.mxu0 %v60
    %76 = vmatmul.bf16.gmra.mxu0 %v43
    %v77 = vpop.f32.mrf.mxu0
    %v78 = vadd.f32 0.0, %v77
    %v79 = vpop.f32.mrf.mxu0
    %80 = vdwg.mxu0
    %v81 = vlaneseq
    %v82 = vand.u32 %v81, 127
    %vm83 = vcmp.lt.s32.totalorder %v82, 16
    %v84 = vsel %vm83, %v78, -inf
    %85 = vmax.xlane.f32.xlu0 %v84
    %v86 = vpop.xlane.xlu0 %85
    %v87 = vsub.f32 %v84, %v86
    %v88 = vmul.f32 %v87, 1.442695
    %v89 = vpow.pop %v88
    %90 = vadd.xlane.f32.xlu0 %v89
    %v91 = vpop.xlane.xlu0 %90
    %v92 = vrcp.pop %v91
    %v93 = vmul.f32 %v91, %v92
    %v94 = vsub.f32 1.0, %v93
    %v95 = vmul.f32 %v92, %v94
    %v96 = vadd.f32 %v92, %v95
    %vm97 = vweird.f32 %v91
    %vm98 = vweird.f32 %v92
    %vm99 = vmor %vm97, %vm98
    %v100 = vsel %vm99, %v92, %v96
    %v101 = vand.u32 2147483647, %v91
    %vm102 = vcmp.eq.f32.partialorder %v101, 8.507059e+37
    %v103 = vand.u32 %v91, 2147483648
    %v104 = vor.u32 1.1754944e-38, %v103
    %v105 = vsel %vm102, %v104, %v100
    %v106 = vmul.f32 %v89, %v105
    %107 = vst [vmem:[#allocation7] sm:$0xff] %v106
    // Predicated region
    $region18: #{tpu_custom_call.1} parent=1 // pred_check
      _
    $region19: #{tpu_custom_call.1} parent=1 // pred_check_branch
      %109 = sbr.rel (0) target = $region21
    $region20: #{tpu_custom_call.1} parent=1 // pred_region
      %111 = vsyncadd [#allocation4], 0
      %s113 = sshll.u32 [#allocation7], 4
      %s114 = int_to_ptr.vmem [resolvable:$true] %s113
      %s115 = sshll.u32 %s2, 4
      %s116 = int_to_ptr.hbm [resolvable:$true] %s115
      %118 = dma.vmem_to_hbm [thread:$0]  %s114, 128, %s116, [#allocation4]
    $region21: #{tpu_custom_call.1} parent=1 // pred_fallthru
      _
    // Predicated region
    $region22: #{tpu_custom_call.1} parent=1 // pred_check
      _
    $region23: #{tpu_custom_call.1} parent=1 // pred_check_branch
      %120 = sbr.rel (0) target = $region25
    $region24: #{tpu_custom_call.1} parent=1 // pred_region
      %122 = dma.done [#allocation4], 128
    $region25: #{tpu_custom_call.1} parent=1 // pred_fallthru
      _
    %123 = vsyncpa [#allocation3], 1
    %124 = vsyncpa [#allocation6], 1
    %125 = vsyncpa [#allocation4], 1

</llo_original>
